<compile_context>
chip_gen: v5e
topology: v5e:2x2
jax: 0.10.0
libtpu: 0.0.40
codegen_flags: <defaults>
</compile_context>

<pallas_src>
import jax
import jax.numpy as jnp
from jax.experimental import pallas as pl
from jax.experimental.pallas import tpu as pltpu


LANE = 128     # pad every feature dim to a multiple of the 128-lane vreg / MXU width
TB_MAX = 128   # max batch-tile rows per grid step


def _round_up(n, m):
    return ((n + m - 1) // m) * m


def ae_kernel(
    x_ref,
    w_e1, b_e1, w_e2, b_e2, w_e3, b_e3,
    w_z, b_z,
    w_d1, b_d1, w_d2, b_d2, w_d3, b_d3,
    w_xb, b_xb,
    xbar_ref, z_ref,
):
    x = x_ref[...]

    def lin(h, w_ref, b_ref):
        # bf16 operands on the MXU, f32 accumulation; bias add stays in f32.
        return (
            jnp.dot(h.astype(jnp.bfloat16), w_ref[...],
                    preferred_element_type=jnp.float32)
            + b_ref[...]
        )

    # Encoder
    h1 = jnp.maximum(lin(x, w_e1, b_e1), 0.0)
    h2 = jnp.maximum(lin(h1, w_e2, b_e2), 0.0)
    h3 = jnp.maximum(lin(h2, w_e3, b_e3), 0.0)
    z = lin(h3, w_z, b_z)

    # Decoder
    d1 = jnp.maximum(lin(z, w_d1, b_d1), 0.0)
    d2 = jnp.maximum(lin(d1, w_d2, b_d2), 0.0)
    d3 = jnp.maximum(lin(d2, w_d3, b_d3), 0.0)
    x_bar = lin(d3, w_xb, b_xb)

    xbar_ref[...] = x_bar.astype(xbar_ref.dtype)
    z_ref[...] = z.astype(z_ref.dtype)


def ae_forward(x, params, *, tb_max=TB_MAX, lane=LANE):
    """x: [B, n_input] f32.  params: list of 8 (W [in, out] f32, b [out] f32)."""
    B, n_input = x.shape
    n_z = params[3][0].shape[1]

    # --- wrapper-side zero padding (one-time cost; exact on the unpadded slice) ---
    dims = [params[0][0].shape[0]] + [w.shape[1] for w, _ in params]
    pdims = [_round_up(d, lane) for d in dims]

    flat = []
    for li, (w, b) in enumerate(params):
        kin, kout = w.shape
        pin, pout = pdims[li], pdims[li + 1]
        w_p = jnp.zeros((pin, pout), jnp.float32).at[:kin, :kout].set(w)
        b_p = jnp.zeros((1, pout), jnp.float32).at[:, :kout].set(b.reshape(1, -1))
        flat.append(w_p.astype(jnp.bfloat16))   # bf16 weights for the MXU
        flat.append(b_p)                        # f32 bias

    # Adaptive batch tile: full 128-row tiles for large B, minimal (8-row
    # aligned) tile for small inference batches so we don't pad 8 -> 128.
    tb = min(tb_max, _round_up(B, 8))
    Bp = _round_up(B, tb)
    x_p = jnp.zeros((Bp, pdims[0]), jnp.float32).at[:B, :n_input].set(x)

    n_in_p, n_z_p = pdims[0], pdims[4]
    grid = (Bp // tb,)

    def row_spec(width):
        return pl.BlockSpec((tb, width), lambda i: (i, 0))

    def resident_spec(shape):
        # Constant block index -> stays VMEM-resident across all batch tiles.
        return pl.BlockSpec(shape, lambda i: (0, 0))

    in_specs = [row_spec(n_in_p)] + [resident_spec(a.shape) for a in flat]

    flops = 2 * Bp * sum(pdims[i] * pdims[i + 1] for i in range(8))
    bytes_accessed = (
        x_p.size * 4
        + sum(int(a.size) * a.dtype.itemsize for a in flat)
        + Bp * (n_in_p + n_z_p) * 4
    )

    xbar_p, z_p = pl.pallas_call(
        ae_kernel,
        grid=grid,
        in_specs=in_specs,
        out_specs=(row_spec(n_in_p), row_spec(n_z_p)),
        out_shape=(
            jax.ShapeDtypeStruct((Bp, n_in_p), jnp.float32),
            jax.ShapeDtypeStruct((Bp, n_z_p), jnp.float32),
        ),
        compiler_params=pltpu.CompilerParams(
            dimension_semantics=("parallel",),
        ),
        cost_estimate=pl.CostEstimate(
            flops=flops, transcendentals=0, bytes_accessed=bytes_accessed
        ),
    )(x_p, *flat)

    # Slice back to the logical (unpadded) shapes.
    return xbar_p[:B, :n_input], z_p[:B, :n_z]


def init_params(key, layer_dims):
    """layer_dims: list of (in_features, out_features).
    PyTorch-Linear-style uniform init; W stored as [in, out] (transposed)."""
    params = []
    for i, (fan_in, fan_out) in enumerate(layer_dims):
        k_w, k_b, key = jax.random.split(jax.random.fold_in(key, i), 3)
        bound = 1.0 / jnp.sqrt(fan_in)
        w = jax.random.uniform(k_w, (fan_in, fan_out), jnp.float32, -bound, bound)
        b = jax.random.uniform(k_b, (fan_out,), jnp.float32, -bound, bound)
        params.append((w, b))
    return params


def ae_reference(x, params):
    """Pure f32 JAX reference matching the PyTorch module."""
    def lin(h, w, b):
        return h @ w + b[None, :]

    h1 = jnp.maximum(lin(x, *params[0]), 0.0)
    h2 = jnp.maximum(lin(h1, *params[1]), 0.0)
    h3 = jnp.maximum(lin(h2, *params[2]), 0.0)
    z = lin(h3, *params[3])
    d1 = jnp.maximum(lin(z, *params[4]), 0.0)
    d2 = jnp.maximum(lin(d1, *params[5]), 0.0)
    d3 = jnp.maximum(lin(d2, *params[6]), 0.0)
    x_bar = lin(d3, *params[7])
    return x_bar, z


if __name__ == "__main__":
    # Small, shape-consistent configuration (AE(n_enc_*, n_dec_*, n_input, n_z)).
    n_input, n_z = 32, 16
    n_enc_1, n_enc_2, n_enc_3 = 64, 64, 128
    n_dec_1, n_dec_2, n_dec_3 = 128, 64, 64
    B = 8

    layer_dims = [
        (n_input, n_enc_1),   # enc_1
        (n_enc_1, n_enc_2),   # enc_2
        (n_enc_2, n_enc_3),   # enc_3
        (n_enc_3, n_z),       # z_layer
        (n_z, n_dec_1),       # dec_1
        (n_dec_1, n_dec_2),   # dec_2
        (n_dec_2, n_dec_3),   # dec_3
        (n_dec_3, n_input),   # x_bar_layer
    ]

    key = jax.random.PRNGKey(0)
    k_x, k_p = jax.random.split(key)
    x = jax.random.normal(k_x, (B, n_input), jnp.float32)
    params = init_params(k_p, layer_dims)

    x_bar, z = jax.jit(ae_forward)(x, params)
    jax.block_until_ready((x_bar, z))

    x_bar_ref, z_ref = ae_reference(x, params)
    assert x_bar.shape == (B, n_input) and z.shape == (B, n_z)
    # Kernel runs the matmuls in bf16 with f32 accumulation -> compare to the
    # f32 reference with a tolerance that covers bf16 operand rounding.
    assert jnp.allclose(x_bar, x_bar_ref, atol=3e-2, rtol=3e-2)
    assert jnp.allclose(z, z_ref, atol=3e-2, rtol=3e-2)

    print("KERNEL_OK")
</pallas_src>

<mosaic_0001>
module attributes {stable_mosaic.version = 11 : i64} {
  func.func @ae_kernel(%arg0: i32, %arg1: memref<8x128xf32, #tpu.memory_space<vmem>>, %arg2: memref<128x128xbf16, #tpu.memory_space<vmem>>, %arg3: memref<1x128xf32, #tpu.memory_space<vmem>>, %arg4: memref<128x128xbf16, #tpu.memory_space<vmem>>, %arg5: memref<1x128xf32, #tpu.memory_space<vmem>>, %arg6: memref<128x128xbf16, #tpu.memory_space<vmem>>, %arg7: memref<1x128xf32, #tpu.memory_space<vmem>>, %arg8: memref<128x128xbf16, #tpu.memory_space<vmem>>, %arg9: memref<1x128xf32, #tpu.memory_space<vmem>>, %arg10: memref<128x128xbf16, #tpu.memory_space<vmem>>, %arg11: memref<1x128xf32, #tpu.memory_space<vmem>>, %arg12: memref<128x128xbf16, #tpu.memory_space<vmem>>, %arg13: memref<1x128xf32, #tpu.memory_space<vmem>>, %arg14: memref<128x128xbf16, #tpu.memory_space<vmem>>, %arg15: memref<1x128xf32, #tpu.memory_space<vmem>>, %arg16: memref<128x128xbf16, #tpu.memory_space<vmem>>, %arg17: memref<1x128xf32, #tpu.memory_space<vmem>>, %arg18: memref<8x128xf32, #tpu.memory_space<vmem>>, %arg19: memref<8x128xf32, #tpu.memory_space<vmem>>) attributes {dimension_semantics = [#tpu.dimension_semantics<parallel>], iteration_bounds = array<i64: 1>, scalar_prefetch = 0 : i64, scratch_operands = 0 : i64, tpu.core_type = #tpu.core_type<tc>, window_params = [{transform_indices = @transform_0, window_bounds = array<i64: 8, 128>}, {pipeline_mode = #tpu.pipeline_mode<synchronous>, transform_indices = @transform_1, window_bounds = array<i64: 128, 128>}, {pipeline_mode = #tpu.pipeline_mode<synchronous>, transform_indices = @transform_2, window_bounds = array<i64: 1, 128>}, {pipeline_mode = #tpu.pipeline_mode<synchronous>, transform_indices = @transform_3, window_bounds = array<i64: 128, 128>}, {pipeline_mode = #tpu.pipeline_mode<synchronous>, transform_indices = @transform_4, window_bounds = array<i64: 1, 128>}, {pipeline_mode = #tpu.pipeline_mode<synchronous>, transform_indices = @transform_5, window_bounds = array<i64: 128, 128>}, {pipeline_mode = #tpu.pipeline_mode<synchronous>, transform_indices = @transform_6, window_bounds = array<i64: 1, 128>}, {pipeline_mode = #tpu.pipeline_mode<synchronous>, transform_indices = @transform_7, window_bounds = array<i64: 128, 128>}, {pipeline_mode = #tpu.pipeline_mode<synchronous>, transform_indices = @transform_8, window_bounds = array<i64: 1, 128>}, {pipeline_mode = #tpu.pipeline_mode<synchronous>, transform_indices = @transform_9, window_bounds = array<i64: 128, 128>}, {pipeline_mode = #tpu.pipeline_mode<synchronous>, transform_indices = @transform_10, window_bounds = array<i64: 1, 128>}, {pipeline_mode = #tpu.pipeline_mode<synchronous>, transform_indices = @transform_11, window_bounds = array<i64: 128, 128>}, {pipeline_mode = #tpu.pipeline_mode<synchronous>, transform_indices = @transform_12, window_bounds = array<i64: 1, 128>}, {pipeline_mode = #tpu.pipeline_mode<synchronous>, transform_indices = @transform_13, window_bounds = array<i64: 128, 128>}, {pipeline_mode = #tpu.pipeline_mode<synchronous>, transform_indices = @transform_14, window_bounds = array<i64: 1, 128>}, {pipeline_mode = #tpu.pipeline_mode<synchronous>, transform_indices = @transform_15, window_bounds = array<i64: 128, 128>}, {pipeline_mode = #tpu.pipeline_mode<synchronous>, transform_indices = @transform_16, window_bounds = array<i64: 1, 128>}, {transform_indices = @transform_17, window_bounds = array<i64: 8, 128>}, {transform_indices = @transform_18, window_bounds = array<i64: 8, 128>}]} {
    %c0 = arith.constant 0 : index
    %c0_0 = arith.constant 0 : index
    %0 = vector.load %arg1[%c0, %c0_0] : memref<8x128xf32, #tpu.memory_space<vmem>>, vector<8x128xf32>
    %1 = arith.truncf %0 : vector<8x128xf32> to vector<8x128xbf16>
    %c0_1 = arith.constant 0 : index
    %c0_2 = arith.constant 0 : index
    %2 = vector.load %arg2[%c0_1, %c0_2] : memref<128x128xbf16, #tpu.memory_space<vmem>>, vector<128x128xbf16>
    %cst = arith.constant dense<0.000000e+00> : vector<8x128xf32>
    %3 = tpu.matmul %1, %2, %cst {dimension_numbers = #tpu.dot_dimension_numbers<[1], [0], [0], [1], [0, 0, 1, 1], [], []>} : vector<8x128xbf16>, vector<128x128xbf16>, vector<8x128xf32> -> vector<8x128xf32>
    %c0_3 = arith.constant 0 : index
    %c0_4 = arith.constant 0 : index
    %4 = vector.load %arg3[%c0_3, %c0_4] : memref<1x128xf32, #tpu.memory_space<vmem>>, vector<1x128xf32>
    %5 = vector.broadcast %4 : vector<1x128xf32> to vector<8x128xf32>
    %6 = arith.addf %3, %5 : vector<8x128xf32>
    %cst_5 = arith.constant 0.000000e+00 : f32
    %7 = vector.broadcast %cst_5 : f32 to vector<8x128xf32>
    %8 = arith.maximumf %6, %7 : vector<8x128xf32>
    %9 = arith.truncf %8 : vector<8x128xf32> to vector<8x128xbf16>
    %c0_6 = arith.constant 0 : index
    %c0_7 = arith.constant 0 : index
    %10 = vector.load %arg4[%c0_6, %c0_7] : memref<128x128xbf16, #tpu.memory_space<vmem>>, vector<128x128xbf16>
    %cst_8 = arith.constant dense<0.000000e+00> : vector<8x128xf32>
    %11 = tpu.matmul %9, %10, %cst_8 {dimension_numbers = #tpu.dot_dimension_numbers<[1], [0], [0], [1], [0, 0, 1, 1], [], []>} : vector<8x128xbf16>, vector<128x128xbf16>, vector<8x128xf32> -> vector<8x128xf32>
    %c0_9 = arith.constant 0 : index
    %c0_10 = arith.constant 0 : index
    %12 = vector.load %arg5[%c0_9, %c0_10] : memref<1x128xf32, #tpu.memory_space<vmem>>, vector<1x128xf32>
    %13 = vector.broadcast %12 : vector<1x128xf32> to vector<8x128xf32>
    %14 = arith.addf %11, %13 : vector<8x128xf32>
    %cst_11 = arith.constant 0.000000e+00 : f32
    %15 = vector.broadcast %cst_11 : f32 to vector<8x128xf32>
    %16 = arith.maximumf %14, %15 : vector<8x128xf32>
    %17 = arith.truncf %16 : vector<8x128xf32> to vector<8x128xbf16>
    %c0_12 = arith.constant 0 : index
    %c0_13 = arith.constant 0 : index
    %18 = vector.load %arg6[%c0_12, %c0_13] : memref<128x128xbf16, #tpu.memory_space<vmem>>, vector<128x128xbf16>
    %cst_14 = arith.constant dense<0.000000e+00> : vector<8x128xf32>
    %19 = tpu.matmul %17, %18, %cst_14 {dimension_numbers = #tpu.dot_dimension_numbers<[1], [0], [0], [1], [0, 0, 1, 1], [], []>} : vector<8x128xbf16>, vector<128x128xbf16>, vector<8x128xf32> -> vector<8x128xf32>
    %c0_15 = arith.constant 0 : index
    %c0_16 = arith.constant 0 : index
    %20 = vector.load %arg7[%c0_15, %c0_16] : memref<1x128xf32, #tpu.memory_space<vmem>>, vector<1x128xf32>
    %21 = vector.broadcast %20 : vector<1x128xf32> to vector<8x128xf32>
    %22 = arith.addf %19, %21 : vector<8x128xf32>
    %cst_17 = arith.constant 0.000000e+00 : f32
    %23 = vector.broadcast %cst_17 : f32 to vector<8x128xf32>
    %24 = arith.maximumf %22, %23 : vector<8x128xf32>
    %25 = arith.truncf %24 : vector<8x128xf32> to vector<8x128xbf16>
    %c0_18 = arith.constant 0 : index
    %c0_19 = arith.constant 0 : index
    %26 = vector.load %arg8[%c0_18, %c0_19] : memref<128x128xbf16, #tpu.memory_space<vmem>>, vector<128x128xbf16>
    %cst_20 = arith.constant dense<0.000000e+00> : vector<8x128xf32>
    %27 = tpu.matmul %25, %26, %cst_20 {dimension_numbers = #tpu.dot_dimension_numbers<[1], [0], [0], [1], [0, 0, 1, 1], [], []>} : vector<8x128xbf16>, vector<128x128xbf16>, vector<8x128xf32> -> vector<8x128xf32>
    %c0_21 = arith.constant 0 : index
    %c0_22 = arith.constant 0 : index
    %28 = vector.load %arg9[%c0_21, %c0_22] : memref<1x128xf32, #tpu.memory_space<vmem>>, vector<1x128xf32>
    %29 = vector.broadcast %28 : vector<1x128xf32> to vector<8x128xf32>
    %30 = arith.addf %27, %29 : vector<8x128xf32>
    %31 = arith.truncf %30 : vector<8x128xf32> to vector<8x128xbf16>
    %c0_23 = arith.constant 0 : index
    %c0_24 = arith.constant 0 : index
    %32 = vector.load %arg10[%c0_23, %c0_24] : memref<128x128xbf16, #tpu.memory_space<vmem>>, vector<128x128xbf16>
    %cst_25 = arith.constant dense<0.000000e+00> : vector<8x128xf32>
    %33 = tpu.matmul %31, %32, %cst_25 {dimension_numbers = #tpu.dot_dimension_numbers<[1], [0], [0], [1], [0, 0, 1, 1], [], []>} : vector<8x128xbf16>, vector<128x128xbf16>, vector<8x128xf32> -> vector<8x128xf32>
    %c0_26 = arith.constant 0 : index
    %c0_27 = arith.constant 0 : index
    %34 = vector.load %arg11[%c0_26, %c0_27] : memref<1x128xf32, #tpu.memory_space<vmem>>, vector<1x128xf32>
    %35 = vector.broadcast %34 : vector<1x128xf32> to vector<8x128xf32>
    %36 = arith.addf %33, %35 : vector<8x128xf32>
    %cst_28 = arith.constant 0.000000e+00 : f32
    %37 = vector.broadcast %cst_28 : f32 to vector<8x128xf32>
    %38 = arith.maximumf %36, %37 : vector<8x128xf32>
    %39 = arith.truncf %38 : vector<8x128xf32> to vector<8x128xbf16>
    %c0_29 = arith.constant 0 : index
    %c0_30 = arith.constant 0 : index
    %40 = vector.load %arg12[%c0_29, %c0_30] : memref<128x128xbf16, #tpu.memory_space<vmem>>, vector<128x128xbf16>
    %cst_31 = arith.constant dense<0.000000e+00> : vector<8x128xf32>
    %41 = tpu.matmul %39, %40, %cst_31 {dimension_numbers = #tpu.dot_dimension_numbers<[1], [0], [0], [1], [0, 0, 1, 1], [], []>} : vector<8x128xbf16>, vector<128x128xbf16>, vector<8x128xf32> -> vector<8x128xf32>
    %c0_32 = arith.constant 0 : index
    %c0_33 = arith.constant 0 : index
    %42 = vector.load %arg13[%c0_32, %c0_33] : memref<1x128xf32, #tpu.memory_space<vmem>>, vector<1x128xf32>
    %43 = vector.broadcast %42 : vector<1x128xf32> to vector<8x128xf32>
    %44 = arith.addf %41, %43 : vector<8x128xf32>
    %cst_34 = arith.constant 0.000000e+00 : f32
    %45 = vector.broadcast %cst_34 : f32 to vector<8x128xf32>
    %46 = arith.maximumf %44, %45 : vector<8x128xf32>
    %47 = arith.truncf %46 : vector<8x128xf32> to vector<8x128xbf16>
    %c0_35 = arith.constant 0 : index
    %c0_36 = arith.constant 0 : index
    %48 = vector.load %arg14[%c0_35, %c0_36] : memref<128x128xbf16, #tpu.memory_space<vmem>>, vector<128x128xbf16>
    %cst_37 = arith.constant dense<0.000000e+00> : vector<8x128xf32>
    %49 = tpu.matmul %47, %48, %cst_37 {dimension_numbers = #tpu.dot_dimension_numbers<[1], [0], [0], [1], [0, 0, 1, 1], [], []>} : vector<8x128xbf16>, vector<128x128xbf16>, vector<8x128xf32> -> vector<8x128xf32>
    %c0_38 = arith.constant 0 : index
    %c0_39 = arith.constant 0 : index
    %50 = vector.load %arg15[%c0_38, %c0_39] : memref<1x128xf32, #tpu.memory_space<vmem>>, vector<1x128xf32>
    %51 = vector.broadcast %50 : vector<1x128xf32> to vector<8x128xf32>
    %52 = arith.addf %49, %51 : vector<8x128xf32>
    %cst_40 = arith.constant 0.000000e+00 : f32
    %53 = vector.broadcast %cst_40 : f32 to vector<8x128xf32>
    %54 = arith.maximumf %52, %53 : vector<8x128xf32>
    %55 = arith.truncf %54 : vector<8x128xf32> to vector<8x128xbf16>
    %c0_41 = arith.constant 0 : index
    %c0_42 = arith.constant 0 : index
    %56 = vector.load %arg16[%c0_41, %c0_42] : memref<128x128xbf16, #tpu.memory_space<vmem>>, vector<128x128xbf16>
    %cst_43 = arith.constant dense<0.000000e+00> : vector<8x128xf32>
    %57 = tpu.matmul %55, %56, %cst_43 {dimension_numbers = #tpu.dot_dimension_numbers<[1], [0], [0], [1], [0, 0, 1, 1], [], []>} : vector<8x128xbf16>, vector<128x128xbf16>, vector<8x128xf32> -> vector<8x128xf32>
    %c0_44 = arith.constant 0 : index
    %c0_45 = arith.constant 0 : index
    %58 = vector.load %arg17[%c0_44, %c0_45] : memref<1x128xf32, #tpu.memory_space<vmem>>, vector<1x128xf32>
    %59 = vector.broadcast %58 : vector<1x128xf32> to vector<8x128xf32>
    %60 = arith.addf %57, %59 : vector<8x128xf32>
    %c0_46 = arith.constant 0 : index
    %c0_47 = arith.constant 0 : index
    %61 = vector.load %arg18[%c0_46, %c0_47] : memref<8x128xf32, #tpu.memory_space<vmem>>, vector<8x128xf32>
    tpu.vector_store %arg18[%c0_46, %c0_47], %60 {strides = array<i32>} : memref<8x128xf32, #tpu.memory_space<vmem>>, vector<8x128xf32>,
    %c0_48 = arith.constant 0 : index
    %c0_49 = arith.constant 0 : index
    %62 = vector.load %arg19[%c0_48, %c0_49] : memref<8x128xf32, #tpu.memory_space<vmem>>, vector<8x128xf32>
    tpu.vector_store %arg19[%c0_48, %c0_49], %30 {strides = array<i32>} : memref<8x128xf32, #tpu.memory_space<vmem>>, vector<8x128xf32>,
    return
  }
  func.func @transform_0(%arg0: i32) -> (i32, i32) {
    %c0_i32 = arith.constant 0 : i32
    %c0_i32_0 = arith.constant 0 : i32
    return %arg0, %c0_i32 : i32, i32
  }
  func.func @transform_1(%arg0: i32) -> (i32, i32) {
    %c0_i32 = arith.constant 0 : i32
    %c0_i32_0 = arith.constant 0 : i32
    %c0_i32_1 = arith.constant 0 : i32
    return %c0_i32, %c0_i32_0 : i32, i32
  }
  func.func @transform_2(%arg0: i32) -> (i32, i32) {
    %c0_i32 = arith.constant 0 : i32
    %c0_i32_0 = arith.constant 0 : i32
    %c0_i32_1 = arith.constant 0 : i32
    return %c0_i32, %c0_i32_0 : i32, i32
  }
  func.func @transform_3(%arg0: i32) -> (i32, i32) {
    %c0_i32 = arith.constant 0 : i32
    %c0_i32_0 = arith.constant 0 : i32
    %c0_i32_1 = arith.constant 0 : i32
    return %c0_i32, %c0_i32_0 : i32, i32
  }
  func.func @transform_4(%arg0: i32) -> (i32, i32) {
    %c0_i32 = arith.constant 0 : i32
    %c0_i32_0 = arith.constant 0 : i32
    %c0_i32_1 = arith.constant 0 : i32
    return %c0_i32, %c0_i32_0 : i32, i32
  }
  func.func @transform_5(%arg0: i32) -> (i32, i32) {
    %c0_i32 = arith.constant 0 : i32
    %c0_i32_0 = arith.constant 0 : i32
    %c0_i32_1 = arith.constant 0 : i32
    return %c0_i32, %c0_i32_0 : i32, i32
  }
  func.func @transform_6(%arg0: i32) -> (i32, i32) {
    %c0_i32 = arith.constant 0 : i32
    %c0_i32_0 = arith.constant 0 : i32
    %c0_i32_1 = arith.constant 0 : i32
    return %c0_i32, %c0_i32_0 : i32, i32
  }
  func.func @transform_7(%arg0: i32) -> (i32, i32) {
    %c0_i32 = arith.constant 0 : i32
    %c0_i32_0 = arith.constant 0 : i32
    %c0_i32_1 = arith.constant 0 : i32
    return %c0_i32, %c0_i32_0 : i32, i32
  }
  func.func @transform_8(%arg0: i32) -> (i32, i32) {
    %c0_i32 = arith.constant 0 : i32
    %c0_i32_0 = arith.constant 0 : i32
    %c0_i32_1 = arith.constant 0 : i32
    return %c0_i32, %c0_i32_0 : i32, i32
  }
  func.func @transform_9(%arg0: i32) -> (i32, i32) {
    %c0_i32 = arith.constant 0 : i32
    %c0_i32_0 = arith.constant 0 : i32
    %c0_i32_1 = arith.constant 0 : i32
    return %c0_i32, %c0_i32_0 : i32, i32
  }
  func.func @transform_10(%arg0: i32) -> (i32, i32) {
    %c0_i32 = arith.constant 0 : i32
    %c0_i32_0 = arith.constant 0 : i32
    %c0_i32_1 = arith.constant 0 : i32
    return %c0_i32, %c0_i32_0 : i32, i32
  }
  func.func @transform_11(%arg0: i32) -> (i32, i32) {
    %c0_i32 = arith.constant 0 : i32
    %c0_i32_0 = arith.constant 0 : i32
    %c0_i32_1 = arith.constant 0 : i32
    return %c0_i32, %c0_i32_0 : i32, i32
  }
  func.func @transform_12(%arg0: i32) -> (i32, i32) {
    %c0_i32 = arith.constant 0 : i32
    %c0_i32_0 = arith.constant 0 : i32
    %c0_i32_1 = arith.constant 0 : i32
    return %c0_i32, %c0_i32_0 : i32, i32
  }
  func.func @transform_13(%arg0: i32) -> (i32, i32) {
    %c0_i32 = arith.constant 0 : i32
    %c0_i32_0 = arith.constant 0 : i32
    %c0_i32_1 = arith.constant 0 : i32
    return %c0_i32, %c0_i32_0 : i32, i32
  }
  func.func @transform_14(%arg0: i32) -> (i32, i32) {
    %c0_i32 = arith.constant 0 : i32
    %c0_i32_0 = arith.constant 0 : i32
    %c0_i32_1 = arith.constant 0 : i32
    return %c0_i32, %c0_i32_0 : i32, i32
  }
  func.func @transform_15(%arg0: i32) -> (i32, i32) {
    %c0_i32 = arith.constant 0 : i32
    %c0_i32_0 = arith.constant 0 : i32
    %c0_i32_1 = arith.constant 0 : i32
    return %c0_i32, %c0_i32_0 : i32, i32
  }
  func.func @transform_16(%arg0: i32) -> (i32, i32) {
    %c0_i32 = arith.constant 0 : i32
    %c0_i32_0 = arith.constant 0 : i32
    %c0_i32_1 = arith.constant 0 : i32
    return %c0_i32, %c0_i32_0 : i32, i32
  }
  func.func @transform_17(%arg0: i32) -> (i32, i32) {
    %c0_i32 = arith.constant 0 : i32
    %c0_i32_0 = arith.constant 0 : i32
    return %arg0, %c0_i32 : i32, i32
  }
  func.func @transform_18(%arg0: i32) -> (i32, i32) {
    %c0_i32 = arith.constant 0 : i32
    %c0_i32_0 = arith.constant 0 : i32
    return %arg0, %c0_i32 : i32, i32
  }
}

</mosaic_0001>

<llo_original>
// kernel: ae_forward.1
$region0: #{ae_forward.1}
  #allocation0 [shape = 'u32[]', space=smem, size = 0x4, offset = 0x4, fixed_abs, tag = 'smem constant byte address 0x4 - core index']
  #allocation1 [shape = 'u32[72,128]{1,0:T(1,128)}', space=vmem, size = 0x9000, scoped, tag = 'internal scratch']
  %s0 = inlined_call_operand.vmem [shape: f32[8,128], index: 0, kind: input, shape index: {}]
  %s1 = inlined_call_operand.vmem [shape: bf16[128,128], index: 1, kind: input, shape index: {}]
  %s2 = inlined_call_operand.vmem [shape: f32[1,128], index: 2, kind: input, shape index: {}]
  %s3 = inlined_call_operand.vmem [shape: bf16[128,128], index: 3, kind: input, shape index: {}]
  %s4 = inlined_call_operand.vmem [shape: f32[1,128], index: 4, kind: input, shape index: {}]
  %s5 = inlined_call_operand.vmem [shape: bf16[128,128], index: 5, kind: input, shape index: {}]
  %s6 = inlined_call_operand.vmem [shape: f32[1,128], index: 6, kind: input, shape index: {}]
  %s7 = inlined_call_operand.vmem [shape: bf16[128,128], index: 7, kind: input, shape index: {}]
  %s8 = inlined_call_operand.vmem [shape: f32[1,128], index: 8, kind: input, shape index: {}]
  %s9 = inlined_call_operand.vmem [shape: bf16[128,128], index: 9, kind: input, shape index: {}]
  %s10 = inlined_call_operand.vmem [shape: f32[1,128], index: 10, kind: input, shape index: {}]
  %s11 = inlined_call_operand.vmem [shape: bf16[128,128], index: 11, kind: input, shape index: {}]
  %s12 = inlined_call_operand.vmem [shape: f32[1,128], index: 12, kind: input, shape index: {}]
  %s13 = inlined_call_operand.vmem [shape: bf16[128,128], index: 13, kind: input, shape index: {}]
  %s14 = inlined_call_operand.vmem [shape: f32[1,128], index: 14, kind: input, shape index: {}]
  %s15 = inlined_call_operand.vmem [shape: bf16[128,128], index: 15, kind: input, shape index: {}]
  %s16 = inlined_call_operand.vmem [shape: f32[1,128], index: 16, kind: input, shape index: {}]
  %s17 = inlined_call_operand.hbm [shape: f32[8,128], index: 17, kind: output, shape index: {0}]
  %s18 = inlined_call_operand.hbm [shape: f32[8,128], index: 18, kind: output, shape index: {1}]
  %19 = xla_tuple %s17, %s18
  %s20 = sld [smem:[#allocation0]]
  $region86: #{ae_forward.1} parent=0
    _
  %s22 = ssub.s32 1, %s20
  %s23 = scalar_select 0, %s22, %s20
  $region1: #{ae_forward.1} parent=0
    #allocation2 [shape = 'u8[4096]{0}', space=vmem, size = 0x1000, scoped, tag = 'output window, operand 0, single buffered']
    #allocation3 [shape = 's32[1]{0}', space=sflag, size = 0x4, scoped, tag = 'scoped memory for ae_forward.1']
    #allocation4 [shape = 'u8[4096]{0}', space=vmem, size = 0x1000, scoped, tag = 'output window, operand 1, single buffered']
    #allocation5 [shape = 's32[1]{0}', space=sflag, size = 0x4, scoped, tag = 'scoped memory for ae_forward.1']
    %24 = vsyncpa [#allocation3], 0
    %25 = vsyncpa [#allocation5], 0
    // Predicated region
    $region2: #{ae_forward.1} parent=1 // pred_check
      _
    $region3: #{ae_forward.1} parent=1 // pred_check_branch
      %27 = sbr.rel (0) target = $region5
    $region4: #{ae_forward.1} parent=1 // pred_region
      _
    $region5: #{ae_forward.1} parent=1 // pred_fallthru
      _
    // Predicated region
    $region6: #{ae_forward.1} parent=1 // pred_check
      _
    $region7: #{ae_forward.1} parent=1 // pred_check_branch
      %29 = sbr.rel (0) target = $region9
    $region8: #{ae_forward.1} parent=1 // pred_region
      _
    $region9: #{ae_forward.1} parent=1 // pred_fallthru
      _
    // Predicated region
    $region10: #{ae_forward.1} parent=1 // pred_check
      _
    $region11: #{ae_forward.1} parent=1 // pred_check_branch
      %31 = sbr.rel (0) target = $region13
    $region12: #{ae_forward.1} parent=1 // pred_region
      _
    $region13: #{ae_forward.1} parent=1 // pred_fallthru
      _
    // Predicated region
    $region14: #{ae_forward.1} parent=1 // pred_check
      _
    $region15: #{ae_forward.1} parent=1 // pred_check_branch
      %33 = sbr.rel (0) target = $region17
    $region16: #{ae_forward.1} parent=1 // pred_region
      _
    $region17: #{ae_forward.1} parent=1 // pred_fallthru
      _
    // Predicated region
    $region18: #{ae_forward.1} parent=1 // pred_check
      _
    $region19: #{ae_forward.1} parent=1 // pred_check_branch
      %35 = sbr.rel (0) target = $region21
    $region20: #{ae_forward.1} parent=1 // pred_region
      _
    $region21: #{ae_forward.1} parent=1 // pred_fallthru
      _
    // Predicated region
    $region22: #{ae_forward.1} parent=1 // pred_check
      _
    $region23: #{ae_forward.1} parent=1 // pred_check_branch
      %37 = sbr.rel (0) target = $region25
    $region24: #{ae_forward.1} parent=1 // pred_region
      _
    $region25: #{ae_forward.1} parent=1 // pred_fallthru
      _
    // Predicated region
    $region26: #{ae_forward.1} parent=1 // pred_check
      _
    $region27: #{ae_forward.1} parent=1 // pred_check_branch
      %39 = sbr.rel (0) target = $region29
    $region28: #{ae_forward.1} parent=1 // pred_region
      _
    $region29: #{ae_forward.1} parent=1 // pred_fallthru
      _
    // Predicated region
    $region30: #{ae_forward.1} parent=1 // pred_check
      _
    $region31: #{ae_forward.1} parent=1 // pred_check_branch
      %41 = sbr.rel (0) target = $region33
    $region32: #{ae_forward.1} parent=1 // pred_region
      _
    $region33: #{ae_forward.1} parent=1 // pred_fallthru
      _
    // Predicated region
    $region34: #{ae_forward.1} parent=1 // pred_check
      _
    $region35: #{ae_forward.1} parent=1 // pred_check_branch
      %43 = sbr.rel (0) target = $region37
    $region36: #{ae_forward.1} parent=1 // pred_region
      _
    $region37: #{ae_forward.1} parent=1 // pred_fallthru
      _
    // Predicated region
    $region38: #{ae_forward.1} parent=1 // pred_check
      _
    $region39: #{ae_forward.1} parent=1 // pred_check_branch
      %45 = sbr.rel (0) target = $region41
    $region40: #{ae_forward.1} parent=1 // pred_region
      _
    $region41: #{ae_forward.1} parent=1 // pred_fallthru
      _
    // Predicated region
    $region42: #{ae_forward.1} parent=1 // pred_check
      _
    $region43: #{ae_forward.1} parent=1 // pred_check_branch
      %47 = sbr.rel (0) target = $region45
    $region44: #{ae_forward.1} parent=1 // pred_region
      _
    $region45: #{ae_forward.1} parent=1 // pred_fallthru
      _
    // Predicated region
    $region46: #{ae_forward.1} parent=1 // pred_check
      _
    $region47: #{ae_forward.1} parent=1 // pred_check_branch
      %49 = sbr.rel (0) target = $region49
    $region48: #{ae_forward.1} parent=1 // pred_region
      _
    $region49: #{ae_forward.1} parent=1 // pred_fallthru
      _
    // Predicated region
    $region50: #{ae_forward.1} parent=1 // pred_check
      _
    $region51: #{ae_forward.1} parent=1 // pred_check_branch
      %51 = sbr.rel (0) target = $region53
    $region52: #{ae_forward.1} parent=1 // pred_region
      _
    $region53: #{ae_forward.1} parent=1 // pred_fallthru
      _
    // Predicated region
    $region54: #{ae_forward.1} parent=1 // pred_check
      _
    $region55: #{ae_forward.1} parent=1 // pred_check_branch
      %53 = sbr.rel (0) target = $region57
    $region56: #{ae_forward.1} parent=1 // pred_region
      _
    $region57: #{ae_forward.1} parent=1 // pred_fallthru
      _
    // Predicated region
    $region58: #{ae_forward.1} parent=1 // pred_check
      _
    $region59: #{ae_forward.1} parent=1 // pred_check_branch
      %55 = sbr.rel (0) target = $region61
    $region60: #{ae_forward.1} parent=1 // pred_region
      _
    $region61: #{ae_forward.1} parent=1 // pred_fallthru
      _
    // Predicated region
    $region62: #{ae_forward.1} parent=1 // pred_check
      _
    $region63: #{ae_forward.1} parent=1 // pred_check_branch
      %57 = sbr.rel (0) target = $region65
    $region64: #{ae_forward.1} parent=1 // pred_region
      _
    $region65: #{ae_forward.1} parent=1 // pred_fallthru
      _
    // Predicated region
    $region66: #{ae_forward.1} parent=1 // pred_check
      _
    $region67: #{ae_forward.1} parent=1 // pred_check_branch
      %59 = sbr.rel (0) target = $region69
    $region68: #{ae_forward.1} parent=1 // pred_region
      _
    $region69: #{ae_forward.1} parent=1 // pred_fallthru
      _
    %v60 = vld [vmem:[%s0] sm:$0xff]
    %v61 = vpack.c.bf16 %v60, %v60
    %v62 = vld [vmem:[%s1] sm:$0xf]
    %v63 = vld [vmem:[%s1 + $0x4] sm:$0xf]
    %v64 = vld [vmem:[%s1 + $0x8] sm:$0xf]
    %v65 = vld [vmem:[%s1 + $0xc] sm:$0xf]
    %v66 = vld [vmem:[%s1 + $0x10] sm:$0xf]
    %v67 = vld [vmem:[%s1 + $0x14] sm:$0xf]
    %v68 = vld [vmem:[%s1 + $0x18] sm:$0xf]
    %v69 = vld [vmem:[%s1 + $0x1c] sm:$0xf]
    %v70 = vld [vmem:[%s1 + $0x20] sm:$0xf]
    %v71 = vld [vmem:[%s1 + $0x24] sm:$0xf]
    %v72 = vld [vmem:[%s1 + $0x28] sm:$0xf]
    %v73 = vld [vmem:[%s1 + $0x2c] sm:$0xf]
    %v74 = vld [vmem:[%s1 + $0x30] sm:$0xf]
    %v75 = vld [vmem:[%s1 + $0x34] sm:$0xf]
    %v76 = vld [vmem:[%s1 + $0x38] sm:$0xf]
    %v77 = vld [vmem:[%s1 + $0x3c] sm:$0xf]
    %v78 = vld [vmem:[%s2] sm:$0x1]
    %v80 = vperm.slane %v78, 0
    %v98 = vunpack.c.l.b16 %v62
    %v99 = vunpack.c.l.b16 %v63
    %v100 = vunpack.c.l.b16 %v64
    %v101 = vunpack.c.l.b16 %v65
    %v102 = vunpack.c.l.b16 %v66
    %v103 = vunpack.c.l.b16 %v67
    %v104 = vunpack.c.l.b16 %v68
    %v105 = vunpack.c.l.b16 %v69
    %v106 = vunpack.c.l.b16 %v70
    %v107 = vunpack.c.l.b16 %v71
    %v108 = vunpack.c.l.b16 %v72
    %v109 = vunpack.c.l.b16 %v73
    %v110 = vunpack.c.l.b16 %v74
    %v111 = vunpack.c.l.b16 %v75
    %v112 = vunpack.c.l.b16 %v76
    %v113 = vunpack.c.l.b16 %v77
    %v114 = vpack.c.b16 %v99, %v98
    %v115 = vpack.c.b16 %v101, %v100
    %v116 = vpack.c.b16 %v103, %v102
    %v117 = vpack.c.b16 %v105, %v104
    %v118 = vpack.c.b16 %v107, %v106
    %v119 = vpack.c.b16 %v109, %v108
    %v120 = vpack.c.b16 %v111, %v110
    %v121 = vpack.c.b16 %v113, %v112
    %130 = vmatpush.bf16.msra.mxu0 %v121
    %131 = vmatpush.bf16.msra.mxu0 %v120
    %132 = vmatpush.bf16.msra.mxu0 %v119
    %133 = vmatpush.bf16.msra.mxu0 %v118
    %134 = vmatpush.bf16.msra.mxu0 %v117
    %135 = vmatpush.bf16.msra.mxu0 %v116
    %136 = vmatpush.bf16.msra.mxu0 %v115
    %137 = vmatpush.bf16.msra.mxu0 %v114
    %138 = vmatmul.bf16.gmra.mxu0 %v61
    %v139 = vpop.f32.mrf.mxu0
    %v140 = vadd.f32 %v80, %v139
    %v141 = vpop.f32.mrf.mxu0
    %142 = vdwg.mxu0
    %v143 = vmax.f32 %v140, 0.0
    %v144 = vpack.c.bf16 %v143, %v143
    %v145 = vld [vmem:[%s3] sm:$0xf]
    %v146 = vld [vmem:[%s3 + $0x4] sm:$0xf]
    %v147 = vld [vmem:[%s3 + $0x8] sm:$0xf]
    %v148 = vld [vmem:[%s3 + $0xc] sm:$0xf]
    %v149 = vld [vmem:[%s3 + $0x10] sm:$0xf]
    %v150 = vld [vmem:[%s3 + $0x14] sm:$0xf]
    %v151 = vld [vmem:[%s3 + $0x18] sm:$0xf]
    %v152 = vld [vmem:[%s3 + $0x1c] sm:$0xf]
    %v153 = vld [vmem:[%s3 + $0x20] sm:$0xf]
    %v154 = vld [vmem:[%s3 + $0x24] sm:$0xf]
    %v155 = vld [vmem:[%s3 + $0x28] sm:$0xf]
    %v156 = vld [vmem:[%s3 + $0x2c] sm:$0xf]
    %v157 = vld [vmem:[%s3 + $0x30] sm:$0xf]
    %v158 = vld [vmem:[%s3 + $0x34] sm:$0xf]
    %v159 = vld [vmem:[%s3 + $0x38] sm:$0xf]
    %v160 = vld [vmem:[%s3 + $0x3c] sm:$0xf]
    %v161 = vld [vmem:[%s4] sm:$0x1]
    %v163 = vperm.slane %v161, 0
    %v181 = vunpack.c.l.b16 %v145
    %v182 = vunpack.c.l.b16 %v146
    %v183 = vunpack.c.l.b16 %v147
    %v184 = vunpack.c.l.b16 %v148
    %v185 = vunpack.c.l.b16 %v149
    %v186 = vunpack.c.l.b16 %v150
    %v187 = vunpack.c.l.b16 %v151
    %v188 = vunpack.c.l.b16 %v152
    %v189 = vunpack.c.l.b16 %v153
    %v190 = vunpack.c.l.b16 %v154
    %v191 = vunpack.c.l.b16 %v155
    %v192 = vunpack.c.l.b16 %v156
    %v193 = vunpack.c.l.b16 %v157
    %v194 = vunpack.c.l.b16 %v158
    %v195 = vunpack.c.l.b16 %v159
    %v196 = vunpack.c.l.b16 %v160
    %v197 = vpack.c.b16 %v182, %v181
    %v198 = vpack.c.b16 %v184, %v183
    %v199 = vpack.c.b16 %v186, %v185
    %v200 = vpack.c.b16 %v188, %v187
    %v201 = vpack.c.b16 %v190, %v189
    %v202 = vpack.c.b16 %v192, %v191
    %v203 = vpack.c.b16 %v194, %v193
    %v204 = vpack.c.b16 %v196, %v195
    %213 = vmatpush.bf16.msra.mxu0 %v204
    %214 = vmatpush.bf16.msra.mxu0 %v203
    %215 = vmatpush.bf16.msra.mxu0 %v202
    %216 = vmatpush.bf16.msra.mxu0 %v201
    %217 = vmatpush.bf16.msra.mxu0 %v200
    %218 = vmatpush.bf16.msra.mxu0 %v199
    %219 = vmatpush.bf16.msra.mxu0 %v198
    %220 = vmatpush.bf16.msra.mxu0 %v197
    %221 = vmatmul.bf16.gmra.mxu0 %v144
    %v222 = vpop.f32.mrf.mxu0
    %v223 = vadd.f32 %v163, %v222
    %v224 = vpop.f32.mrf.mxu0
    %225 = vdwg.mxu0
    %v226 = vmax.f32 %v223, 0.0
    %v227 = vpack.c.bf16 %v226, %v226
    %v228 = vld [vmem:[%s5] sm:$0xf]
    %v229 = vld [vmem:[%s5 + $0x4] sm:$0xf]
    %v230 = vld [vmem:[%s5 + $0x8] sm:$0xf]
    %v231 = vld [vmem:[%s5 + $0xc] sm:$0xf]
    %v232 = vld [vmem:[%s5 + $0x10] sm:$0xf]
    %v233 = vld [vmem:[%s5 + $0x14] sm:$0xf]
    %v234 = vld [vmem:[%s5 + $0x18] sm:$0xf]
    %v235 = vld [vmem:[%s5 + $0x1c] sm:$0xf]
    %v236 = vld [vmem:[%s5 + $0x20] sm:$0xf]
    %v237 = vld [vmem:[%s5 + $0x24] sm:$0xf]
    %v238 = vld [vmem:[%s5 + $0x28] sm:$0xf]
    %v239 = vld [vmem:[%s5 + $0x2c] sm:$0xf]
    %v240 = vld [vmem:[%s5 + $0x30] sm:$0xf]
    %v241 = vld [vmem:[%s5 + $0x34] sm:$0xf]
    %v242 = vld [vmem:[%s5 + $0x38] sm:$0xf]
    %v243 = vld [vmem:[%s5 + $0x3c] sm:$0xf]
    %v244 = vld [vmem:[%s6] sm:$0x1]
    %v246 = vperm.slane %v244, 0
    %v264 = vunpack.c.l.b16 %v228
    %v265 = vunpack.c.l.b16 %v229
    %v266 = vunpack.c.l.b16 %v230
    %v267 = vunpack.c.l.b16 %v231
    %v268 = vunpack.c.l.b16 %v232
    %v269 = vunpack.c.l.b16 %v233
    %v270 = vunpack.c.l.b16 %v234
    %v271 = vunpack.c.l.b16 %v235
    %v272 = vunpack.c.l.b16 %v236
    %v273 = vunpack.c.l.b16 %v237
    %v274 = vunpack.c.l.b16 %v238
    %v275 = vunpack.c.l.b16 %v239
    %v276 = vunpack.c.l.b16 %v240
    %v277 = vunpack.c.l.b16 %v241
    %v278 = vunpack.c.l.b16 %v242
    %v279 = vunpack.c.l.b16 %v243
    %v280 = vpack.c.b16 %v265, %v264
    %v281 = vpack.c.b16 %v267, %v266
    %v282 = vpack.c.b16 %v269, %v268
    %v283 = vpack.c.b16 %v271, %v270
    %v284 = vpack.c.b16 %v273, %v272
    %v285 = vpack.c.b16 %v275, %v274
    %v286 = vpack.c.b16 %v277, %v276
    %v287 = vpack.c.b16 %v279, %v278
    %296 = vmatpush.bf16.msra.mxu0 %v287
    %297 = vmatpush.bf16.msra.mxu0 %v286
    %298 = vmatpush.bf16.msra.mxu0 %v285
    %299 = vmatpush.bf16.msra.mxu0 %v284
    %300 = vmatpush.bf16.msra.mxu0 %v283
    %301 = vmatpush.bf16.msra.mxu0 %v282
    %302 = vmatpush.bf16.msra.mxu0 %v281
    %303 = vmatpush.bf16.msra.mxu0 %v280
    %304 = vmatmul.bf16.gmra.mxu0 %v227
    %v305 = vpop.f32.mrf.mxu0
    %v306 = vadd.f32 %v246, %v305
    %v307 = vpop.f32.mrf.mxu0
    %308 = vdwg.mxu0
    %v309 = vmax.f32 %v306, 0.0
    %v310 = vpack.c.bf16 %v309, %v309
    %v311 = vld [vmem:[%s7] sm:$0xf]
    %v312 = vld [vmem:[%s7 + $0x4] sm:$0xf]
    %v313 = vld [vmem:[%s7 + $0x8] sm:$0xf]
    %v314 = vld [vmem:[%s7 + $0xc] sm:$0xf]
    %v315 = vld [vmem:[%s7 + $0x10] sm:$0xf]
    %v316 = vld [vmem:[%s7 + $0x14] sm:$0xf]
    %v317 = vld [vmem:[%s7 + $0x18] sm:$0xf]
    %v318 = vld [vmem:[%s7 + $0x1c] sm:$0xf]
    %v319 = vld [vmem:[%s7 + $0x20] sm:$0xf]
    %v320 = vld [vmem:[%s7 + $0x24] sm:$0xf]
    %v321 = vld [vmem:[%s7 + $0x28] sm:$0xf]
    %v322 = vld [vmem:[%s7 + $0x2c] sm:$0xf]
    %v323 = vld [vmem:[%s7 + $0x30] sm:$0xf]
    %v324 = vld [vmem:[%s7 + $0x34] sm:$0xf]
    %v325 = vld [vmem:[%s7 + $0x38] sm:$0xf]
    %v326 = vld [vmem:[%s7 + $0x3c] sm:$0xf]
    %v327 = vld [vmem:[%s8] sm:$0x1]
    %v329 = vperm.slane %v327, 0
    %v347 = vunpack.c.l.b16 %v311
    %v348 = vunpack.c.l.b16 %v312
    %v349 = vunpack.c.l.b16 %v313
    %v350 = vunpack.c.l.b16 %v314
    %v351 = vunpack.c.l.b16 %v315
    %v352 = vunpack.c.l.b16 %v316
    %v353 = vunpack.c.l.b16 %v317
    %v354 = vunpack.c.l.b16 %v318
    %v355 = vunpack.c.l.b16 %v319
    %v356 = vunpack.c.l.b16 %v320
    %v357 = vunpack.c.l.b16 %v321
    %v358 = vunpack.c.l.b16 %v322
    %v359 = vunpack.c.l.b16 %v323
    %v360 = vunpack.c.l.b16 %v324
    %v361 = vunpack.c.l.b16 %v325
    %v362 = vunpack.c.l.b16 %v326
    %v363 = vpack.c.b16 %v348, %v347
    %v364 = vpack.c.b16 %v350, %v349
    %v365 = vpack.c.b16 %v352, %v351
    %v366 = vpack.c.b16 %v354, %v353
    %v367 = vpack.c.b16 %v356, %v355
    %v368 = vpack.c.b16 %v358, %v357
    %v369 = vpack.c.b16 %v360, %v359
    %v370 = vpack.c.b16 %v362, %v361
    %379 = vmatpush.bf16.msra.mxu0 %v370
    %380 = vmatpush.bf16.msra.mxu0 %v369
    %381 = vmatpush.bf16.msra.mxu0 %v368
    %382 = vmatpush.bf16.msra.mxu0 %v367
    %383 = vmatpush.bf16.msra.mxu0 %v366
    %384 = vmatpush.bf16.msra.mxu0 %v365
    %385 = vmatpush.bf16.msra.mxu0 %v364
    %386 = vmatpush.bf16.msra.mxu0 %v363
    %387 = vmatmul.bf16.gmra.mxu0 %v310
    %v388 = vpop.f32.mrf.mxu0
    %v389 = vadd.f32 %v329, %v388
    %v390 = vpop.f32.mrf.mxu0
    %391 = vdwg.mxu0
    %v392 = vpack.c.bf16 %v389, %v389
    %v393 = vld [vmem:[%s9] sm:$0xf]
    %v394 = vld [vmem:[%s9 + $0x4] sm:$0xf]
    %v395 = vld [vmem:[%s9 + $0x8] sm:$0xf]
    %v396 = vld [vmem:[%s9 + $0xc] sm:$0xf]
    %v397 = vld [vmem:[%s9 + $0x10] sm:$0xf]
    %v398 = vld [vmem:[%s9 + $0x14] sm:$0xf]
    %v399 = vld [vmem:[%s9 + $0x18] sm:$0xf]
    %v400 = vld [vmem:[%s9 + $0x1c] sm:$0xf]
    %v401 = vld [vmem:[%s9 + $0x20] sm:$0xf]
    %v402 = vld [vmem:[%s9 + $0x24] sm:$0xf]
    %v403 = vld [vmem:[%s9 + $0x28] sm:$0xf]
    %v404 = vld [vmem:[%s9 + $0x2c] sm:$0xf]
    %v405 = vld [vmem:[%s9 + $0x30] sm:$0xf]
    %v406 = vld [vmem:[%s9 + $0x34] sm:$0xf]
    %v407 = vld [vmem:[%s9 + $0x38] sm:$0xf]
    %v408 = vld [vmem:[%s9 + $0x3c] sm:$0xf]
    %v409 = vld [vmem:[%s10] sm:$0x1]
    %v411 = vperm.slane %v409, 0
    %v429 = vunpack.c.l.b16 %v393
    %v430 = vunpack.c.l.b16 %v394
    %v431 = vunpack.c.l.b16 %v395
    %v432 = vunpack.c.l.b16 %v396
    %v433 = vunpack.c.l.b16 %v397
    %v434 = vunpack.c.l.b16 %v398
    %v435 = vunpack.c.l.b16 %v399
    %v436 = vunpack.c.l.b16 %v400
    %v437 = vunpack.c.l.b16 %v401
    %v438 = vunpack.c.l.b16 %v402
    %v439 = vunpack.c.l.b16 %v403
    %v440 = vunpack.c.l.b16 %v404
    %v441 = vunpack.c.l.b16 %v405
    %v442 = vunpack.c.l.b16 %v406
    %v443 = vunpack.c.l.b16 %v407
    %v444 = vunpack.c.l.b16 %v408
    %v445 = vpack.c.b16 %v430, %v429
    %v446 = vpack.c.b16 %v432, %v431
    %v447 = vpack.c.b16 %v434, %v433
    %v448 = vpack.c.b16 %v436, %v435
    %v449 = vpack.c.b16 %v438, %v437
    %v450 = vpack.c.b16 %v440, %v439
    %v451 = vpack.c.b16 %v442, %v441
    %v452 = vpack.c.b16 %v444, %v443
    %461 = vmatpush.bf16.msra.mxu0 %v452
    %462 = vmatpush.bf16.msra.mxu0 %v451
    %463 = vmatpush.bf16.msra.mxu0 %v450
    %464 = vmatpush.bf16.msra.mxu0 %v449
    %465 = vmatpush.bf16.msra.mxu0 %v448
    %466 = vmatpush.bf16.msra.mxu0 %v447
    %467 = vmatpush.bf16.msra.mxu0 %v446
    %468 = vmatpush.bf16.msra.mxu0 %v445
    %469 = vmatmul.bf16.gmra.mxu0 %v392
    %v470 = vpop.f32.mrf.mxu0
    %v471 = vadd.f32 %v411, %v470
    %v472 = vpop.f32.mrf.mxu0
    %473 = vdwg.mxu0
    %v474 = vmax.f32 %v471, 0.0
    %v475 = vpack.c.bf16 %v474, %v474
    %v476 = vld [vmem:[%s11] sm:$0xf]
    %v477 = vld [vmem:[%s11 + $0x4] sm:$0xf]
    %v478 = vld [vmem:[%s11 + $0x8] sm:$0xf]
    %v479 = vld [vmem:[%s11 + $0xc] sm:$0xf]
    %v480 = vld [vmem:[%s11 + $0x10] sm:$0xf]
    %v481 = vld [vmem:[%s11 + $0x14] sm:$0xf]
    %v482 = vld [vmem:[%s11 + $0x18] sm:$0xf]
    %v483 = vld [vmem:[%s11 + $0x1c] sm:$0xf]
    %v484 = vld [vmem:[%s11 + $0x20] sm:$0xf]
    %v485 = vld [vmem:[%s11 + $0x24] sm:$0xf]
    %v486 = vld [vmem:[%s11 + $0x28] sm:$0xf]
    %v487 = vld [vmem:[%s11 + $0x2c] sm:$0xf]
    %v488 = vld [vmem:[%s11 + $0x30] sm:$0xf]
    %v489 = vld [vmem:[%s11 + $0x34] sm:$0xf]
    %v490 = vld [vmem:[%s11 + $0x38] sm:$0xf]
    %v491 = vld [vmem:[%s11 + $0x3c] sm:$0xf]
    %v492 = vld [vmem:[%s12] sm:$0x1]
    %v494 = vperm.slane %v492, 0
    %v512 = vunpack.c.l.b16 %v476
    %v513 = vunpack.c.l.b16 %v477
    %v514 = vunpack.c.l.b16 %v478
    %v515 = vunpack.c.l.b16 %v479
    %v516 = vunpack.c.l.b16 %v480
    %v517 = vunpack.c.l.b16 %v481
    %v518 = vunpack.c.l.b16 %v482
    %v519 = vunpack.c.l.b16 %v483
    %v520 = vunpack.c.l.b16 %v484
    %v521 = vunpack.c.l.b16 %v485
    %v522 = vunpack.c.l.b16 %v486
    %v523 = vunpack.c.l.b16 %v487
    %v524 = vunpack.c.l.b16 %v488
    %v525 = vunpack.c.l.b16 %v489
    %v526 = vunpack.c.l.b16 %v490
    %v527 = vunpack.c.l.b16 %v491
    %v528 = vpack.c.b16 %v513, %v512
    %v529 = vpack.c.b16 %v515, %v514
    %v530 = vpack.c.b16 %v517, %v516
    %v531 = vpack.c.b16 %v519, %v518
    %v532 = vpack.c.b16 %v521, %v520
    %v533 = vpack.c.b16 %v523, %v522
    %v534 = vpack.c.b16 %v525, %v524
    %v535 = vpack.c.b16 %v527, %v526
    %544 = vmatpush.bf16.msra.mxu0 %v535
    %545 = vmatpush.bf16.msra.mxu0 %v534
    %546 = vmatpush.bf16.msra.mxu0 %v533
    %547 = vmatpush.bf16.msra.mxu0 %v532
    %548 = vmatpush.bf16.msra.mxu0 %v531
    %549 = vmatpush.bf16.msra.mxu0 %v530
    %550 = vmatpush.bf16.msra.mxu0 %v529
    %551 = vmatpush.bf16.msra.mxu0 %v528
    %552 = vmatmul.bf16.gmra.mxu0 %v475
    %v553 = vpop.f32.mrf.mxu0
    %v554 = vadd.f32 %v494, %v553
    %v555 = vpop.f32.mrf.mxu0
    %556 = vdwg.mxu0
    %v557 = vmax.f32 %v554, 0.0
    %v558 = vpack.c.bf16 %v557, %v557
    %v559 = vld [vmem:[%s13] sm:$0xf]
    %v560 = vld [vmem:[%s13 + $0x4] sm:$0xf]
    %v561 = vld [vmem:[%s13 + $0x8] sm:$0xf]
    %v562 = vld [vmem:[%s13 + $0xc] sm:$0xf]
    %v563 = vld [vmem:[%s13 + $0x10] sm:$0xf]
    %v564 = vld [vmem:[%s13 + $0x14] sm:$0xf]
    %v565 = vld [vmem:[%s13 + $0x18] sm:$0xf]
    %v566 = vld [vmem:[%s13 + $0x1c] sm:$0xf]
    %v567 = vld [vmem:[%s13 + $0x20] sm:$0xf]
    %v568 = vld [vmem:[%s13 + $0x24] sm:$0xf]
    %v569 = vld [vmem:[%s13 + $0x28] sm:$0xf]
    %v570 = vld [vmem:[%s13 + $0x2c] sm:$0xf]
    %v571 = vld [vmem:[%s13 + $0x30] sm:$0xf]
    %v572 = vld [vmem:[%s13 + $0x34] sm:$0xf]
    %v573 = vld [vmem:[%s13 + $0x38] sm:$0xf]
    %v574 = vld [vmem:[%s13 + $0x3c] sm:$0xf]
    %v575 = vld [vmem:[%s14] sm:$0x1]
    %v577 = vperm.slane %v575, 0
    %v595 = vunpack.c.l.b16 %v559
    %v596 = vunpack.c.l.b16 %v560
    %v597 = vunpack.c.l.b16 %v561
    %v598 = vunpack.c.l.b16 %v562
    %v599 = vunpack.c.l.b16 %v563
    %v600 = vunpack.c.l.b16 %v564
    %v601 = vunpack.c.l.b16 %v565
    %v602 = vunpack.c.l.b16 %v566
    %v603 = vunpack.c.l.b16 %v567
    %v604 = vunpack.c.l.b16 %v568
    %v605 = vunpack.c.l.b16 %v569
    %v606 = vunpack.c.l.b16 %v570
    %v607 = vunpack.c.l.b16 %v571
    %v608 = vunpack.c.l.b16 %v572
    %v609 = vunpack.c.l.b16 %v573
    %v610 = vunpack.c.l.b16 %v574
    %v611 = vpack.c.b16 %v596, %v595
    %v612 = vpack.c.b16 %v598, %v597
    %v613 = vpack.c.b16 %v600, %v599
    %v614 = vpack.c.b16 %v602, %v601
    %v615 = vpack.c.b16 %v604, %v603
    %v616 = vpack.c.b16 %v606, %v605
    %v617 = vpack.c.b16 %v608, %v607
    %v618 = vpack.c.b16 %v610, %v609
    %627 = vmatpush.bf16.msra.mxu0 %v618
    %628 = vmatpush.bf16.msra.mxu0 %v617
    %629 = vmatpush.bf16.msra.mxu0 %v616
    %630 = vmatpush.bf16.msra.mxu0 %v615
    %631 = vmatpush.bf16.msra.mxu0 %v614
    %632 = vmatpush.bf16.msra.mxu0 %v613
    %633 = vmatpush.bf16.msra.mxu0 %v612
    %634 = vmatpush.bf16.msra.mxu0 %v611
    %635 = vmatmul.bf16.gmra.mxu0 %v558
    %v636 = vpop.f32.mrf.mxu0
    %v637 = vadd.f32 %v577, %v636
    %v638 = vpop.f32.mrf.mxu0
    %639 = vdwg.mxu0
    %v640 = vmax.f32 %v637, 0.0
    %v641 = vpack.c.bf16 %v640, %v640
    %v642 = vld [vmem:[%s15] sm:$0xf]
    %v643 = vld [vmem:[%s15 + $0x4] sm:$0xf]
    %v644 = vld [vmem:[%s15 + $0x8] sm:$0xf]
    %v645 = vld [vmem:[%s15 + $0xc] sm:$0xf]
    %v646 = vld [vmem:[%s15 + $0x10] sm:$0xf]
    %v647 = vld [vmem:[%s15 + $0x14] sm:$0xf]
    %v648 = vld [vmem:[%s15 + $0x18] sm:$0xf]
    %v649 = vld [vmem:[%s15 + $0x1c] sm:$0xf]
    %v650 = vld [vmem:[%s15 + $0x20] sm:$0xf]
    %v651 = vld [vmem:[%s15 + $0x24] sm:$0xf]
    %v652 = vld [vmem:[%s15 + $0x28] sm:$0xf]
    %v653 = vld [vmem:[%s15 + $0x2c] sm:$0xf]
    %v654 = vld [vmem:[%s15 + $0x30] sm:$0xf]
    %v655 = vld [vmem:[%s15 + $0x34] sm:$0xf]
    %v656 = vld [vmem:[%s15 + $0x38] sm:$0xf]
    %v657 = vld [vmem:[%s15 + $0x3c] sm:$0xf]
    %v658 = vld [vmem:[%s16] sm:$0x1]
    %v660 = vperm.slane %v658, 0
    %v678 = vunpack.c.l.b16 %v642
    %v679 = vunpack.c.l.b16 %v643
    %v680 = vunpack.c.l.b16 %v644
    %v681 = vunpack.c.l.b16 %v645
    %v682 = vunpack.c.l.b16 %v646
    %v683 = vunpack.c.l.b16 %v647
    %v684 = vunpack.c.l.b16 %v648
    %v685 = vunpack.c.l.b16 %v649
    %v686 = vunpack.c.l.b16 %v650
    %v687 = vunpack.c.l.b16 %v651
    %v688 = vunpack.c.l.b16 %v652
    %v689 = vunpack.c.l.b16 %v653
    %v690 = vunpack.c.l.b16 %v654
    %v691 = vunpack.c.l.b16 %v655
    %v692 = vunpack.c.l.b16 %v656
    %v693 = vunpack.c.l.b16 %v657
    %v694 = vpack.c.b16 %v679, %v678
    %v695 = vpack.c.b16 %v681, %v680
    %v696 = vpack.c.b16 %v683, %v682
    %v697 = vpack.c.b16 %v685, %v684
    %v698 = vpack.c.b16 %v687, %v686
    %v699 = vpack.c.b16 %v689, %v688
    %v700 = vpack.c.b16 %v691, %v690
    %v701 = vpack.c.b16 %v693, %v692
    %710 = vmatpush.bf16.msra.mxu0 %v701
    %711 = vmatpush.bf16.msra.mxu0 %v700
    %712 = vmatpush.bf16.msra.mxu0 %v699
    %713 = vmatpush.bf16.msra.mxu0 %v698
    %714 = vmatpush.bf16.msra.mxu0 %v697
    %715 = vmatpush.bf16.msra.mxu0 %v696
    %716 = vmatpush.bf16.msra.mxu0 %v695
    %717 = vmatpush.bf16.msra.mxu0 %v694
    %718 = vmatmul.bf16.gmra.mxu0 %v641
    %v719 = vpop.f32.mrf.mxu0
    %v720 = vadd.f32 %v660, %v719
    %v721 = vpop.f32.mrf.mxu0
    %722 = vdwg.mxu0
    %723 = vst [vmem:[#allocation2] sm:$0xff] %v720
    %724 = vst [vmem:[#allocation4] sm:$0xff] %v389
    // Predicated region
    $region70: #{ae_forward.1} parent=1 // pred_check
      _
    $region71: #{ae_forward.1} parent=1 // pred_check_branch
      %726 = sbr.rel (0) target = $region73
    $region72: #{ae_forward.1} parent=1 // pred_region
      %728 = vsyncadd [#allocation3], 0
      %s730 = sshll.u32 [#allocation2], 4
      %s731 = int_to_ptr.vmem [resolvable:$true] %s730
      %s732 = sshll.u32 %s17, 4
      %s733 = int_to_ptr.hbm [resolvable:$true] %s732
      %735 = dma.vmem_to_hbm [thread:$0]  %s731, 128, %s733, [#allocation3]
    $region73: #{ae_forward.1} parent=1 // pred_fallthru
      _
    // Predicated region
    $region74: #{ae_forward.1} parent=1 // pred_check
      _
    $region75: #{ae_forward.1} parent=1 // pred_check_branch
      %737 = sbr.rel (0) target = $region77
    $region76: #{ae_forward.1} parent=1 // pred_region
      %739 = vsyncadd [#allocation5], 0
      %s741 = sshll.u32 [#allocation4], 4
      %s742 = int_to_ptr.vmem [resolvable:$true] %s741
      %s743 = sshll.u32 %s18, 4
      %s744 = int_to_ptr.hbm [resolvable:$true] %s743
      %746 = dma.vmem_to_hbm [thread:$0]  %s742, 128, %s744, [#allocation5]
    $region77: #{ae_forward.1} parent=1 // pred_fallthru
      _
    // Predicated region
    $region78: #{ae_forward.1} parent=1 // pred_check
      _
    $region79: #{ae_forward.1} parent=1 // pred_check_branch
      %748 = sbr.rel (0) target = $region81
    $region80: #{ae_forward.1} parent=1 // pred_region
      %750 = dma.done [#allocation3], 128
    $region81: #{ae_forward.1} parent=1 // pred_fallthru
      _
    // Predicated region
    $region82: #{ae_forward.1} parent=1 // pred_check
      _
    $region83: #{ae_forward.1} parent=1 // pred_check_branch
      %752 = sbr.rel (0) target = $region85
    $region84: #{ae_forward.1} parent=1 // pred_region
      %754 = dma.done [#allocation5], 128
    $region85: #{ae_forward.1} parent=1 // pred_fallthru
      _
    %755 = vsyncpa [#allocation3], 1
    %756 = vsyncpa [#allocation5], 1

</llo_original>
